<compile_context>
chip_gen: v7x
topology: tpu7x:2x2x1
jax: 0.10.0
libtpu: 0.0.40
codegen_flags: <defaults>
</compile_context>

<pallas_src>
import jax
import jax.numpy as jnp
from jax.experimental import pallas as pl
from jax.experimental.pallas import tpu as pltpu

IN_FEATURES = 28 * 28       # 784
HIDDEN = 128
TILE_B = 1024               # default batch tile (fits v5e 16 MiB scoped VMEM)


def _round_up(x, m):
    return ((x + m - 1) // m) * m


def _choose_tile(B, tile_b):
    """Even split of the batch into 128-row-multiple tiles.

    Forces >= 2 grid steps when B >= 256 so v7x's second TensorCore gets work
    under dimension_semantics=("parallel",).  Padding stays small (< one tile)
    instead of nearly doubling the batch.
    """
    n = pl.cdiv(B, tile_b)
    if B >= 256:
        n = max(n, 2)
    tb = _round_up(pl.cdiv(B, n), 128)
    Bp = _round_up(B, tb)
    return tb, Bp


def mlp_kernel(x_ref, w1_ref, b1_ref, w2_ref, b2_ref, o_ref):
    # x tile arrives in the producer's narrow dtype (bf16 / uint8 / ...);
    # upcast to bf16 in-VMEM for the MXU, accumulate in f32.
    x = x_ref[...].astype(jnp.bfloat16)
    h = jnp.dot(x, w1_ref[...], preferred_element_type=jnp.float32)
    h = jnp.maximum(h + b1_ref[...], 0.0)                 # bias + ReLU in f32
    y = jnp.dot(h.astype(jnp.bfloat16), w2_ref[...],
                preferred_element_type=jnp.float32)
    o_ref[...] = (y + b2_ref[...]).astype(o_ref.dtype)


def simple_mlp_forward(x_nchw, w1, b1, w2, b2, *, tile_b=TILE_B):
    """x_nchw: (B, 1, 28, 28), any real dtype (bf16/uint8 preferred -- it is
    streamed from HBM as-is).  Returns logits (B, num_classes) f32.

    w1: (784, 128), b1: (128,), w2: (128, num_classes), b2: (num_classes,)
    (weights are PyTorch weight.T, i.e. (in_features, out_features)).
    """
    B = x_nchw.shape[0]
    num_classes = w2.shape[1]
    x = x_nchw.reshape(B, IN_FEATURES)          # == x.view(-1, 784), dtype kept

    tb, Bp = _choose_tile(B, tile_b)
    if Bp != B:
        # Padded rows compute relu(b1)@w2+b2 (garbage) -- sliced off below.
        x = jnp.pad(x, ((0, Bp - B), (0, 0)))

    w1_bf = w1.astype(jnp.bfloat16)
    w2_bf = w2.astype(jnp.bfloat16)
    b1_2d = b1.reshape(1, HIDDEN).astype(jnp.float32)
    b2_2d = b2.reshape(1, num_classes).astype(jnp.float32)

    grid = (Bp // tb,)
    out = pl.pallas_call(
        mlp_kernel,
        out_shape=jax.ShapeDtypeStruct((Bp, num_classes), jnp.float32),
        grid=grid,
        in_specs=[
            # x: tiled over batch (pipelined, double-buffered), narrow dtype.
            pl.BlockSpec((tb, IN_FEATURES), lambda i: (i, 0)),
            # Weights/biases: constant block index -> kept resident in VMEM.
            pl.BlockSpec((IN_FEATURES, HIDDEN), lambda i: (0, 0)),
            pl.BlockSpec((1, HIDDEN), lambda i: (0, 0)),
            pl.BlockSpec((HIDDEN, num_classes), lambda i: (0, 0)),
            pl.BlockSpec((1, num_classes), lambda i: (0, 0)),
        ],
        # Last dim == full array dim (num_classes), so no lane padding needed.
        out_specs=pl.BlockSpec((tb, num_classes), lambda i: (i, 0)),
        compiler_params=pltpu.CompilerParams(
            dimension_semantics=("parallel",)),
    )(x, w1_bf, b1_2d, w2_bf, b2_2d)

    return out if Bp == B else out[:B]          # row-only slice when padded


def init_params(key, num_classes=10):
    """Init mimicking nn.Linear defaults (uniform +/- 1/sqrt(fan_in)).

    Weights stored as (in_features, out_features), i.e. PyTorch weight.T.
    """
    k1, k2, k3, k4 = jax.random.split(key, 4)
    lim1 = 1.0 / jnp.sqrt(float(IN_FEATURES))
    lim2 = 1.0 / jnp.sqrt(float(HIDDEN))
    w1 = jax.random.uniform(k1, (IN_FEATURES, HIDDEN), jnp.float32, -lim1, lim1)
    b1 = jax.random.uniform(k2, (HIDDEN,), jnp.float32, -lim1, lim1)
    w2 = jax.random.uniform(k3, (HIDDEN, num_classes), jnp.float32, -lim2, lim2)
    b2 = jax.random.uniform(k4, (num_classes,), jnp.float32, -lim2, lim2)
    return w1, b1, w2, b2


if __name__ == "__main__":
    key = jax.random.PRNGKey(0)
    kx, kp = jax.random.split(key)

    B = 8
    # Producer supplies x already in a narrow dtype (bf16), per perf review.
    x = jax.random.normal(kx, (B, 1, 28, 28), jnp.bfloat16)  # NCHW MNIST-like
    w1, b1, w2, b2 = init_params(kp)

    logits = simple_mlp_forward(x, w1, b1, w2, b2)
    logits = jax.block_until_ready(logits)
    assert logits.shape == (B, 10)
    assert logits.dtype == jnp.float32

    # Reference with matching bf16-operand / f32-accumulate matmuls.
    xf = x.reshape(B, IN_FEATURES)
    h_ref = jnp.maximum(
        jnp.dot(xf.astype(jnp.bfloat16), w1.astype(jnp.bfloat16),
                preferred_element_type=jnp.float32) + b1, 0.0)
    ref_bf16 = jnp.dot(h_ref.astype(jnp.bfloat16), w2.astype(jnp.bfloat16),
                       preferred_element_type=jnp.float32) + b2
    assert jnp.allclose(logits, ref_bf16, atol=2e-3, rtol=2e-3)

    # Looser sanity check against the pure-f32 math of the original module.
    xf32 = xf.astype(jnp.float32)
    ref_f32 = jnp.maximum(xf32 @ w1 + b1, 0.0) @ w2 + b2
    assert jnp.allclose(logits, ref_f32, atol=5e-2, rtol=5e-2)

    # Also exercise the padded-batch / multi-step-grid path (B not a multiple
    # of 128, B >= 256 so the grid has >= 2 steps).
    B2 = 300
    x2 = jax.random.normal(jax.random.PRNGKey(1), (B2, 1, 28, 28), jnp.bfloat16)
    logits2 = jax.block_until_ready(simple_mlp_forward(x2, w1, b1, w2, b2))
    assert logits2.shape == (B2, 10)
    xf2 = x2.reshape(B2, IN_FEATURES).astype(jnp.float32)
    ref2 = jnp.maximum(xf2 @ w1 + b1, 0.0) @ w2 + b2
    assert jnp.allclose(logits2, ref2, atol=5e-2, rtol=5e-2)

    print("KERNEL_OK")
</pallas_src>

<mosaic_0001>
module attributes {stable_mosaic.version = 11 : i64} {
  func.func @mlp_kernel(%arg0: i32, %arg1: memref<128x784xbf16, #tpu.memory_space<vmem>>, %arg2: memref<784x128xbf16, #tpu.memory_space<vmem>>, %arg3: memref<1x128xf32, #tpu.memory_space<vmem>>, %arg4: memref<128x10xbf16, #tpu.memory_space<vmem>>, %arg5: memref<1x10xf32, #tpu.memory_space<vmem>>, %arg6: memref<128x10xf32, #tpu.memory_space<vmem>>) attributes {dimension_semantics = [#tpu.dimension_semantics<parallel>], iteration_bounds = array<i64: 1>, scalar_prefetch = 0 : i64, scratch_operands = 0 : i64, tpu.core_type = #tpu.core_type<tc>, window_params = [{transform_indices = @transform_0, window_bounds = array<i64: 128, 784>}, {pipeline_mode = #tpu.pipeline_mode<synchronous>, transform_indices = @transform_1, window_bounds = array<i64: 784, 128>}, {pipeline_mode = #tpu.pipeline_mode<synchronous>, transform_indices = @transform_2, window_bounds = array<i64: 1, 128>}, {pipeline_mode = #tpu.pipeline_mode<synchronous>, transform_indices = @transform_3, window_bounds = array<i64: 128, 10>}, {pipeline_mode = #tpu.pipeline_mode<synchronous>, transform_indices = @transform_4, window_bounds = array<i64: 1, 10>}, {transform_indices = @transform_5, window_bounds = array<i64: 128, 10>}]} {
    %c0 = arith.constant 0 : index
    %c0_0 = arith.constant 0 : index
    %0 = vector.load %arg1[%c0, %c0_0] : memref<128x784xbf16, #tpu.memory_space<vmem>>, vector<128x784xbf16>
    %c0_1 = arith.constant 0 : index
    %c0_2 = arith.constant 0 : index
    %1 = vector.load %arg2[%c0_1, %c0_2] : memref<784x128xbf16, #tpu.memory_space<vmem>>, vector<784x128xbf16>
    %cst = arith.constant dense<0.000000e+00> : vector<128x128xf32>
    %2 = tpu.matmul %0, %1, %cst {dimension_numbers = #tpu.dot_dimension_numbers<[1], [0], [0], [1], [0, 0, 1, 1], [], []>} : vector<128x784xbf16>, vector<784x128xbf16>, vector<128x128xf32> -> vector<128x128xf32>
    %c0_3 = arith.constant 0 : index
    %c0_4 = arith.constant 0 : index
    %3 = vector.load %arg3[%c0_3, %c0_4] : memref<1x128xf32, #tpu.memory_space<vmem>>, vector<1x128xf32>
    %4 = vector.broadcast %3 : vector<1x128xf32> to vector<128x128xf32>
    %5 = arith.addf %2, %4 : vector<128x128xf32>
    %cst_5 = arith.constant 0.000000e+00 : f32
    %6 = vector.broadcast %cst_5 : f32 to vector<128x128xf32>
    %7 = arith.maximumf %5, %6 : vector<128x128xf32>
    %8 = arith.truncf %7 : vector<128x128xf32> to vector<128x128xbf16>
    %c0_6 = arith.constant 0 : index
    %c0_7 = arith.constant 0 : index
    %9 = vector.load %arg4[%c0_6, %c0_7] : memref<128x10xbf16, #tpu.memory_space<vmem>>, vector<128x10xbf16>
    %cst_8 = arith.constant dense<0.000000e+00> : vector<128x10xf32>
    %10 = tpu.matmul %8, %9, %cst_8 {dimension_numbers = #tpu.dot_dimension_numbers<[1], [0], [0], [1], [0, 0, 1, 1], [], []>} : vector<128x128xbf16>, vector<128x10xbf16>, vector<128x10xf32> -> vector<128x10xf32>
    %c0_9 = arith.constant 0 : index
    %c0_10 = arith.constant 0 : index
    %11 = vector.load %arg5[%c0_9, %c0_10] : memref<1x10xf32, #tpu.memory_space<vmem>>, vector<1x10xf32>
    %12 = vector.broadcast %11 : vector<1x10xf32> to vector<128x10xf32>
    %13 = arith.addf %10, %12 : vector<128x10xf32>
    %c0_11 = arith.constant 0 : index
    %c0_12 = arith.constant 0 : index
    %14 = vector.load %arg6[%c0_11, %c0_12] : memref<128x10xf32, #tpu.memory_space<vmem>>, vector<128x10xf32>
    tpu.vector_store %arg6[%c0_11, %c0_12], %13 {strides = array<i32>} : memref<128x10xf32, #tpu.memory_space<vmem>>, vector<128x10xf32>,
    return
  }
  func.func @transform_0(%arg0: i32) -> (i32, i32) {
    %c0_i32 = arith.constant 0 : i32
    %c0_i32_0 = arith.constant 0 : i32
    return %arg0, %c0_i32 : i32, i32
  }
  func.func @transform_1(%arg0: i32) -> (i32, i32) {
    %c0_i32 = arith.constant 0 : i32
    %c0_i32_0 = arith.constant 0 : i32
    %c0_i32_1 = arith.constant 0 : i32
    return %c0_i32, %c0_i32_0 : i32, i32
  }
  func.func @transform_2(%arg0: i32) -> (i32, i32) {
    %c0_i32 = arith.constant 0 : i32
    %c0_i32_0 = arith.constant 0 : i32
    %c0_i32_1 = arith.constant 0 : i32
    return %c0_i32, %c0_i32_0 : i32, i32
  }
  func.func @transform_3(%arg0: i32) -> (i32, i32) {
    %c0_i32 = arith.constant 0 : i32
    %c0_i32_0 = arith.constant 0 : i32
    %c0_i32_1 = arith.constant 0 : i32
    return %c0_i32, %c0_i32_0 : i32, i32
  }
  func.func @transform_4(%arg0: i32) -> (i32, i32) {
    %c0_i32 = arith.constant 0 : i32
    %c0_i32_0 = arith.constant 0 : i32
    %c0_i32_1 = arith.constant 0 : i32
    return %c0_i32, %c0_i32_0 : i32, i32
  }
  func.func @transform_5(%arg0: i32) -> (i32, i32) {
    %c0_i32 = arith.constant 0 : i32
    %c0_i32_0 = arith.constant 0 : i32
    return %arg0, %c0_i32 : i32, i32
  }
}

</mosaic_0001>

<llo_original>
// kernel: tpu_custom_call.1
$region0: #{tpu_custom_call.1}
  #allocation0 [shape = 'u32[]', space=smem, size = 0x4, offset = 0x4, fixed_abs, tag = 'smem constant byte address 0x4 - core index']
  #allocation1 [shape = 'u32[144,128]{1,0:T(1,128)}', space=vmem, size = 0x12000, scoped, tag = 'internal scratch']
  %s0 = inlined_call_operand.vmem [shape: bf16[128,784], index: 0, kind: input, shape index: {}]
  %s1 = inlined_call_operand.vmem [shape: bf16[784,128], index: 1, kind: input, shape index: {}]
  %s2 = inlined_call_operand.vmem [shape: f32[1,128], index: 2, kind: input, shape index: {}]
  %s3 = inlined_call_operand.vmem [shape: bf16[128,10], index: 3, kind: input, shape index: {}]
  %s4 = inlined_call_operand.vmem [shape: f32[1,10], index: 4, kind: input, shape index: {}]
  %s5 = inlined_call_operand.vmem [shape: f32[128,10], index: 5, kind: output, shape index: {}]
  %s6 = sld [smem:[#allocation0]]
  $region30: #{tpu_custom_call.1} parent=0
    _
  %s8 = ssub.s32 1, %s6
  %s9 = scalar_select 0, %s8, %s6
  // Predicated region
  $region2: #{tpu_custom_call.1} parent=0 // pred_check
    _
  $region3: #{tpu_custom_call.1} parent=0 // pred_check_branch
    %11 = sbr.rel (0) target = $region5
  $region4: #{tpu_custom_call.1} parent=0 // pred_region
    _
  $region5: #{tpu_custom_call.1} parent=0 // pred_fallthru
    _
  // Predicated region
  $region6: #{tpu_custom_call.1} parent=0 // pred_check
    _
  $region7: #{tpu_custom_call.1} parent=0 // pred_check_branch
    %13 = sbr.rel (0) target = $region9
  $region8: #{tpu_custom_call.1} parent=0 // pred_region
    _
  $region9: #{tpu_custom_call.1} parent=0 // pred_fallthru
    _
  // Predicated region
  $region10: #{tpu_custom_call.1} parent=0 // pred_check
    _
  $region11: #{tpu_custom_call.1} parent=0 // pred_check_branch
    %15 = sbr.rel (0) target = $region13
  $region12: #{tpu_custom_call.1} parent=0 // pred_region
    _
  $region13: #{tpu_custom_call.1} parent=0 // pred_fallthru
    _
  // Predicated region
  $region14: #{tpu_custom_call.1} parent=0 // pred_check
    _
  $region15: #{tpu_custom_call.1} parent=0 // pred_check_branch
    %17 = sbr.rel (0) target = $region17
  $region16: #{tpu_custom_call.1} parent=0 // pred_region
    _
  $region17: #{tpu_custom_call.1} parent=0 // pred_fallthru
    _
  // Predicated region
  $region18: #{tpu_custom_call.1} parent=0 // pred_check
    _
  $region19: #{tpu_custom_call.1} parent=0 // pred_check_branch
    %19 = sbr.rel (0) target = $region21
  $region20: #{tpu_custom_call.1} parent=0 // pred_region
    _
  $region21: #{tpu_custom_call.1} parent=0 // pred_fallthru
    _
  %v21 = vld [vmem:[%s0] sm:$0xff]
  %v22 = vld [vmem:[%s0 + $0x8] sm:$0xff]
  %v23 = vld [vmem:[%s0 + $0x10] sm:$0xff]
  %v24 = vld [vmem:[%s0 + $0x18] sm:$0xf]
  %v25 = vld [vmem:[%s0 + $0x1c] sm:$0xff]
  %v26 = vld [vmem:[%s0 + $0x24] sm:$0xff]
  %v27 = vld [vmem:[%s0 + $0x2c] sm:$0xff]
  %v28 = vld [vmem:[%s0 + $0x34] sm:$0xf]
  %v29 = vld [vmem:[%s0 + $0x38] sm:$0xff]
  %v30 = vld [vmem:[%s0 + $0x40] sm:$0xff]
  %v31 = vld [vmem:[%s0 + $0x48] sm:$0xff]
  %v32 = vld [vmem:[%s0 + $0x50] sm:$0xf]
  %v33 = vld [vmem:[%s0 + $0x54] sm:$0xff]
  %v34 = vld [vmem:[%s0 + $0x5c] sm:$0xff]
  %v35 = vld [vmem:[%s0 + $0x64] sm:$0xff]
  %v36 = vld [vmem:[%s0 + $0x6c] sm:$0xf]
  %v37 = vld [vmem:[%s0 + $0x70] sm:$0xff]
  %v38 = vld [vmem:[%s0 + $0x78] sm:$0xff]
  %v39 = vld [vmem:[%s0 + $0x80] sm:$0xff]
  %v40 = vld [vmem:[%s0 + $0x88] sm:$0xf]
  %v41 = vld [vmem:[%s0 + $0x8c] sm:$0xff]
  %v42 = vld [vmem:[%s0 + $0x94] sm:$0xff]
  %v43 = vld [vmem:[%s0 + $0x9c] sm:$0xff]
  %v44 = vld [vmem:[%s0 + $0xa4] sm:$0xf]
  %v45 = vld [vmem:[%s0 + $0xa8] sm:$0xff]
  %v46 = vld [vmem:[%s0 + $0xb0] sm:$0xff]
  %v47 = vld [vmem:[%s0 + $0xb8] sm:$0xff]
  %v48 = vld [vmem:[%s0 + $0xc0] sm:$0xf]
  %v49 = vld [vmem:[%s0 + $0xc4] sm:$0xff]
  %v50 = vld [vmem:[%s0 + $0xcc] sm:$0xff]
  %v51 = vld [vmem:[%s0 + $0xd4] sm:$0xff]
  %v52 = vld [vmem:[%s0 + $0xdc] sm:$0xf]
  %v53 = vld [vmem:[%s0 + $0xe0] sm:$0xff]
  %v54 = vld [vmem:[%s0 + $0xe8] sm:$0xff]
  %v55 = vld [vmem:[%s0 + $0xf0] sm:$0xff]
  %v56 = vld [vmem:[%s0 + $0xf8] sm:$0xf]
  %v57 = vld [vmem:[%s0 + $0xfc] sm:$0xff]
  %v58 = vld [vmem:[%s0 + $0x104] sm:$0xff]
  %v59 = vld [vmem:[%s0 + $0x10c] sm:$0xff]
  %v60 = vld [vmem:[%s0 + $0x114] sm:$0xf]
  %v61 = vld [vmem:[%s0 + $0x118] sm:$0xff]
  %v62 = vld [vmem:[%s0 + $0x120] sm:$0xff]
  %v63 = vld [vmem:[%s0 + $0x128] sm:$0xff]
  %v64 = vld [vmem:[%s0 + $0x130] sm:$0xf]
  %v65 = vld [vmem:[%s0 + $0x134] sm:$0xff]
  %v66 = vld [vmem:[%s0 + $0x13c] sm:$0xff]
  %v67 = vld [vmem:[%s0 + $0x144] sm:$0xff]
  %v68 = vld [vmem:[%s0 + $0x14c] sm:$0xf]
  %v69 = vld [vmem:[%s0 + $0x150] sm:$0xff]
  %v70 = vld [vmem:[%s0 + $0x158] sm:$0xff]
  %v71 = vld [vmem:[%s0 + $0x160] sm:$0xff]
  %v72 = vld [vmem:[%s0 + $0x168] sm:$0xf]
  %v73 = vld [vmem:[%s0 + $0x16c] sm:$0xff]
  %v74 = vld [vmem:[%s0 + $0x174] sm:$0xff]
  %v75 = vld [vmem:[%s0 + $0x17c] sm:$0xff]
  %v76 = vld [vmem:[%s0 + $0x184] sm:$0xf]
  %v77 = vld [vmem:[%s0 + $0x188] sm:$0xff]
  %v78 = vld [vmem:[%s0 + $0x190] sm:$0xff]
  %v79 = vld [vmem:[%s0 + $0x198] sm:$0xff]
  %v80 = vld [vmem:[%s0 + $0x1a0] sm:$0xf]
  %v81 = vld [vmem:[%s0 + $0x1a4] sm:$0xff]
  %v82 = vld [vmem:[%s0 + $0x1ac] sm:$0xff]
  %v83 = vld [vmem:[%s0 + $0x1b4] sm:$0xff]
  %v84 = vld [vmem:[%s0 + $0x1bc] sm:$0xf]
  %v85 = vld [vmem:[%s1] sm:$0xf]
  %v86 = vld [vmem:[%s1 + $0x4] sm:$0xf]
  %v87 = vld [vmem:[%s1 + $0x8] sm:$0xf]
  %v88 = vld [vmem:[%s1 + $0xc] sm:$0xf]
  %v89 = vld [vmem:[%s1 + $0x10] sm:$0xf]
  %v90 = vld [vmem:[%s1 + $0x14] sm:$0xf]
  %v91 = vld [vmem:[%s1 + $0x18] sm:$0xf]
  %v92 = vld [vmem:[%s1 + $0x1c] sm:$0xf]
  %v93 = vld [vmem:[%s1 + $0x20] sm:$0xf]
  %v94 = vld [vmem:[%s1 + $0x24] sm:$0xf]
  %v95 = vld [vmem:[%s1 + $0x28] sm:$0xf]
  %v96 = vld [vmem:[%s1 + $0x2c] sm:$0xf]
  %v97 = vld [vmem:[%s1 + $0x30] sm:$0xf]
  %v98 = vld [vmem:[%s1 + $0x34] sm:$0xf]
  %v99 = vld [vmem:[%s1 + $0x38] sm:$0xf]
  %v100 = vld [vmem:[%s1 + $0x3c] sm:$0xf]
  %v101 = vld [vmem:[%s1 + $0x40] sm:$0xf]
  %v102 = vld [vmem:[%s1 + $0x44] sm:$0xf]
  %v103 = vld [vmem:[%s1 + $0x48] sm:$0xf]
  %v104 = vld [vmem:[%s1 + $0x4c] sm:$0xf]
  %v105 = vld [vmem:[%s1 + $0x50] sm:$0xf]
  %v106 = vld [vmem:[%s1 + $0x54] sm:$0xf]
  %v107 = vld [vmem:[%s1 + $0x58] sm:$0xf]
  %v108 = vld [vmem:[%s1 + $0x5c] sm:$0xf]
  %v109 = vld [vmem:[%s1 + $0x60] sm:$0xf]
  %v110 = vld [vmem:[%s1 + $0x64] sm:$0xf]
  %v111 = vld [vmem:[%s1 + $0x68] sm:$0xf]
  %v112 = vld [vmem:[%s1 + $0x6c] sm:$0xf]
  %v113 = vld [vmem:[%s1 + $0x70] sm:$0xf]
  %v114 = vld [vmem:[%s1 + $0x74] sm:$0xf]
  %v115 = vld [vmem:[%s1 + $0x78] sm:$0xf]
  %v116 = vld [vmem:[%s1 + $0x7c] sm:$0xf]
  %v117 = vld [vmem:[%s1 + $0x80] sm:$0xf]
  %v118 = vld [vmem:[%s1 + $0x84] sm:$0xf]
  %v119 = vld [vmem:[%s1 + $0x88] sm:$0xf]
  %v120 = vld [vmem:[%s1 + $0x8c] sm:$0xf]
  %v121 = vld [vmem:[%s1 + $0x90] sm:$0xf]
  %v122 = vld [vmem:[%s1 + $0x94] sm:$0xf]
  %v123 = vld [vmem:[%s1 + $0x98] sm:$0xf]
  %v124 = vld [vmem:[%s1 + $0x9c] sm:$0xf]
  %v125 = vld [vmem:[%s1 + $0xa0] sm:$0xf]
  %v126 = vld [vmem:[%s1 + $0xa4] sm:$0xf]
  %v127 = vld [vmem:[%s1 + $0xa8] sm:$0xf]
  %v128 = vld [vmem:[%s1 + $0xac] sm:$0xf]
  %v129 = vld [vmem:[%s1 + $0xb0] sm:$0xf]
  %v130 = vld [vmem:[%s1 + $0xb4] sm:$0xf]
  %v131 = vld [vmem:[%s1 + $0xb8] sm:$0xf]
  %v132 = vld [vmem:[%s1 + $0xbc] sm:$0xf]
  %v133 = vld [vmem:[%s1 + $0xc0] sm:$0xf]
  %v134 = vld [vmem:[%s1 + $0xc4] sm:$0xf]
  %v135 = vld [vmem:[%s1 + $0xc8] sm:$0xf]
  %v136 = vld [vmem:[%s1 + $0xcc] sm:$0xf]
  %v137 = vld [vmem:[%s1 + $0xd0] sm:$0xf]
  %v138 = vld [vmem:[%s1 + $0xd4] sm:$0xf]
  %v139 = vld [vmem:[%s1 + $0xd8] sm:$0xf]
  %v140 = vld [vmem:[%s1 + $0xdc] sm:$0xf]
  %v141 = vld [vmem:[%s1 + $0xe0] sm:$0xf]
  %v142 = vld [vmem:[%s1 + $0xe4] sm:$0xf]
  %v143 = vld [vmem:[%s1 + $0xe8] sm:$0xf]
  %v144 = vld [vmem:[%s1 + $0xec] sm:$0xf]
  %v145 = vld [vmem:[%s1 + $0xf0] sm:$0xf]
  %v146 = vld [vmem:[%s1 + $0xf4] sm:$0xf]
  %v147 = vld [vmem:[%s1 + $0xf8] sm:$0xf]
  %v148 = vld [vmem:[%s1 + $0xfc] sm:$0xf]
  %v149 = vld [vmem:[%s1 + $0x100] sm:$0xf]
  %v150 = vld [vmem:[%s1 + $0x104] sm:$0xf]
  %v151 = vld [vmem:[%s1 + $0x108] sm:$0xf]
  %v152 = vld [vmem:[%s1 + $0x10c] sm:$0xf]
  %v153 = vld [vmem:[%s1 + $0x110] sm:$0xf]
  %v154 = vld [vmem:[%s1 + $0x114] sm:$0xf]
  %v155 = vld [vmem:[%s1 + $0x118] sm:$0xf]
  %v156 = vld [vmem:[%s1 + $0x11c] sm:$0xf]
  %v157 = vld [vmem:[%s1 + $0x120] sm:$0xf]
  %v158 = vld [vmem:[%s1 + $0x124] sm:$0xf]
  %v159 = vld [vmem:[%s1 + $0x128] sm:$0xf]
  %v160 = vld [vmem:[%s1 + $0x12c] sm:$0xf]
  %v161 = vld [vmem:[%s1 + $0x130] sm:$0xf]
  %v162 = vld [vmem:[%s1 + $0x134] sm:$0xf]
  %v163 = vld [vmem:[%s1 + $0x138] sm:$0xf]
  %v164 = vld [vmem:[%s1 + $0x13c] sm:$0xf]
  %v165 = vld [vmem:[%s1 + $0x140] sm:$0xf]
  %v166 = vld [vmem:[%s1 + $0x144] sm:$0xf]
  %v167 = vld [vmem:[%s1 + $0x148] sm:$0xf]
  %v168 = vld [vmem:[%s1 + $0x14c] sm:$0xf]
  %v169 = vld [vmem:[%s1 + $0x150] sm:$0xf]
  %v170 = vld [vmem:[%s1 + $0x154] sm:$0xf]
  %v171 = vld [vmem:[%s1 + $0x158] sm:$0xf]
  %v172 = vld [vmem:[%s1 + $0x15c] sm:$0xf]
  %v173 = vld [vmem:[%s1 + $0x160] sm:$0xf]
  %v174 = vld [vmem:[%s1 + $0x164] sm:$0xf]
  %v175 = vld [vmem:[%s1 + $0x168] sm:$0xf]
  %v176 = vld [vmem:[%s1 + $0x16c] sm:$0xf]
  %v177 = vld [vmem:[%s1 + $0x170] sm:$0xf]
  %v178 = vld [vmem:[%s1 + $0x174] sm:$0xf]
  %v179 = vld [vmem:[%s1 + $0x178] sm:$0xf]
  %v180 = vld [vmem:[%s1 + $0x17c] sm:$0xf]
  %v181 = vld [vmem:[%s1 + $0x180] sm:$0xf]
  %v182 = vld [vmem:[%s1 + $0x184] sm:$0xf]
  %v183 = vld [vmem:[%s2] sm:$0x1]
  %v185 = vlaneseq
  %v186 = vshrl.u32 %v185, 7
  %v187 = vsub.s32 0, %v186
  %v188 = vrot.slane %v183, %v187
  %v254 = vunpack.c.l.b16 %v21
  %v255 = vunpack.c.h.b16 %v21
  %v256 = vunpack.c.l.b16 %v22
  %v257 = vunpack.c.h.b16 %v22
  %v258 = vunpack.c.l.b16 %v23
  %v259 = vunpack.c.h.b16 %v23
  %v260 = vunpack.c.l.b16 %v24
  %v261 = vunpack.c.l.b16 %v25
  %v262 = vunpack.c.h.b16 %v25
  %v263 = vunpack.c.l.b16 %v26
  %v264 = vunpack.c.h.b16 %v26
  %v265 = vunpack.c.l.b16 %v27
  %v266 = vunpack.c.h.b16 %v27
  %v267 = vunpack.c.l.b16 %v28
  %v268 = vunpack.c.l.b16 %v29
  %v269 = vunpack.c.h.b16 %v29
  %v270 = vunpack.c.l.b16 %v30
  %v271 = vunpack.c.h.b16 %v30
  %v272 = vunpack.c.l.b16 %v31
  %v273 = vunpack.c.h.b16 %v31
  %v274 = vunpack.c.l.b16 %v32
  %v275 = vunpack.c.l.b16 %v33
  %v276 = vunpack.c.h.b16 %v33
  %v277 = vunpack.c.l.b16 %v34
  %v278 = vunpack.c.h.b16 %v34
  %v279 = vunpack.c.l.b16 %v35
  %v280 = vunpack.c.h.b16 %v35
  %v281 = vunpack.c.l.b16 %v36
  %v282 = vunpack.c.l.b16 %v37
  %v283 = vunpack.c.h.b16 %v37
  %v284 = vunpack.c.l.b16 %v38
  %v285 = vunpack.c.h.b16 %v38
  %v286 = vunpack.c.l.b16 %v39
  %v287 = vunpack.c.h.b16 %v39
  %v288 = vunpack.c.l.b16 %v40
  %v289 = vunpack.c.l.b16 %v41
  %v290 = vunpack.c.h.b16 %v41
  %v291 = vunpack.c.l.b16 %v42
  %v292 = vunpack.c.h.b16 %v42
  %v293 = vunpack.c.l.b16 %v43
  %v294 = vunpack.c.h.b16 %v43
  %v295 = vunpack.c.l.b16 %v44
  %v296 = vunpack.c.l.b16 %v45
  %v297 = vunpack.c.h.b16 %v45
  %v298 = vunpack.c.l.b16 %v46
  %v299 = vunpack.c.h.b16 %v46
  %v300 = vunpack.c.l.b16 %v47
  %v301 = vunpack.c.h.b16 %v47
  %v302 = vunpack.c.l.b16 %v48
  %v303 = vunpack.c.l.b16 %v49
  %v304 = vunpack.c.h.b16 %v49
  %v305 = vunpack.c.l.b16 %v50
  %v306 = vunpack.c.h.b16 %v50
  %v307 = vunpack.c.l.b16 %v51
  %v308 = vunpack.c.h.b16 %v51
  %v309 = vunpack.c.l.b16 %v52
  %v310 = vunpack.c.l.b16 %v53
  %v311 = vunpack.c.h.b16 %v53
  %v312 = vunpack.c.l.b16 %v54
  %v313 = vunpack.c.h.b16 %v54
  %v314 = vunpack.c.l.b16 %v55
  %v315 = vunpack.c.h.b16 %v55
  %v316 = vunpack.c.l.b16 %v56
  %v317 = vunpack.c.l.b16 %v57
  %v318 = vunpack.c.h.b16 %v57
  %v319 = vunpack.c.l.b16 %v58
  %v320 = vunpack.c.h.b16 %v58
  %v321 = vunpack.c.l.b16 %v59
  %v322 = vunpack.c.h.b16 %v59
  %v323 = vunpack.c.l.b16 %v60
  %v324 = vunpack.c.l.b16 %v61
  %v325 = vunpack.c.h.b16 %v61
  %v326 = vunpack.c.l.b16 %v62
  %v327 = vunpack.c.h.b16 %v62
  %v328 = vunpack.c.l.b16 %v63
  %v329 = vunpack.c.h.b16 %v63
  %v330 = vunpack.c.l.b16 %v64
  %v331 = vunpack.c.l.b16 %v65
  %v332 = vunpack.c.h.b16 %v65
  %v333 = vunpack.c.l.b16 %v66
  %v334 = vunpack.c.h.b16 %v66
  %v335 = vunpack.c.l.b16 %v67
  %v336 = vunpack.c.h.b16 %v67
  %v337 = vunpack.c.l.b16 %v68
  %v338 = vunpack.c.l.b16 %v69
  %v339 = vunpack.c.h.b16 %v69
  %v340 = vunpack.c.l.b16 %v70
  %v341 = vunpack.c.h.b16 %v70
  %v342 = vunpack.c.l.b16 %v71
  %v343 = vunpack.c.h.b16 %v71
  %v344 = vunpack.c.l.b16 %v72
  %v345 = vunpack.c.l.b16 %v73
  %v346 = vunpack.c.h.b16 %v73
  %v347 = vunpack.c.l.b16 %v74
  %v348 = vunpack.c.h.b16 %v74
  %v349 = vunpack.c.l.b16 %v75
  %v350 = vunpack.c.h.b16 %v75
  %v351 = vunpack.c.l.b16 %v76
  %v352 = vunpack.c.l.b16 %v77
  %v353 = vunpack.c.h.b16 %v77
  %v354 = vunpack.c.l.b16 %v78
  %v355 = vunpack.c.h.b16 %v78
  %v356 = vunpack.c.l.b16 %v79
  %v357 = vunpack.c.h.b16 %v79
  %v358 = vunpack.c.l.b16 %v80
  %v359 = vunpack.c.l.b16 %v81
  %v360 = vunpack.c.h.b16 %v81
  %v361 = vunpack.c.l.b16 %v82
  %v362 = vunpack.c.h.b16 %v82
  %v363 = vunpack.c.l.b16 %v83
  %v364 = vunpack.c.h.b16 %v83
  %v365 = vunpack.c.l.b16 %v84
  %v366 = vpack.c.b16 %v261, %v254
  %v367 = vpack.c.b16 %v262, %v255
  %v368 = vpack.c.b16 %v263, %v256
  %v369 = vpack.c.b16 %v264, %v257
  %v370 = vpack.c.b16 %v265, %v258
  %v371 = vpack.c.b16 %v266, %v259
  %v372 = vpack.c.b16 %v267, %v260
  %v373 = vpack.c.b16 %v275, %v268
  %v374 = vpack.c.b16 %v276, %v269
  %v375 = vpack.c.b16 %v277, %v270
  %v376 = vpack.c.b16 %v278, %v271
  %v377 = vpack.c.b16 %v279, %v272
  %v378 = vpack.c.b16 %v280, %v273
  %v379 = vpack.c.b16 %v281, %v274
  %v380 = vpack.c.b16 %v289, %v282
  %v381 = vpack.c.b16 %v290, %v283
  %v382 = vpack.c.b16 %v291, %v284
  %v383 = vpack.c.b16 %v292, %v285
  %v384 = vpack.c.b16 %v293, %v286
  %v385 = vpack.c.b16 %v294, %v287
  %v386 = vpack.c.b16 %v295, %v288
  %v387 = vpack.c.b16 %v303, %v296
  %v388 = vpack.c.b16 %v304, %v297
  %v389 = vpack.c.b16 %v305, %v298
  %v390 = vpack.c.b16 %v306, %v299
  %v391 = vpack.c.b16 %v307, %v300
  %v392 = vpack.c.b16 %v308, %v301
  %v393 = vpack.c.b16 %v309, %v302
  %v394 = vpack.c.b16 %v317, %v310
  %v395 = vpack.c.b16 %v318, %v311
  %v396 = vpack.c.b16 %v319, %v312
  %v397 = vpack.c.b16 %v320, %v313
  %v398 = vpack.c.b16 %v321, %v314
  %v399 = vpack.c.b16 %v322, %v315
  %v400 = vpack.c.b16 %v323, %v316
  %v401 = vpack.c.b16 %v331, %v324
  %v402 = vpack.c.b16 %v332, %v325
  %v403 = vpack.c.b16 %v333, %v326
  %v404 = vpack.c.b16 %v334, %v327
  %v405 = vpack.c.b16 %v335, %v328
  %v406 = vpack.c.b16 %v336, %v329
  %v407 = vpack.c.b16 %v337, %v330
  %v408 = vpack.c.b16 %v345, %v338
  %v409 = vpack.c.b16 %v346, %v339
  %v410 = vpack.c.b16 %v347, %v340
  %v411 = vpack.c.b16 %v348, %v341
  %v412 = vpack.c.b16 %v349, %v342
  %v413 = vpack.c.b16 %v350, %v343
  %v414 = vpack.c.b16 %v351, %v344
  %v415 = vpack.c.b16 %v359, %v352
  %v416 = vpack.c.b16 %v360, %v353
  %v417 = vpack.c.b16 %v361, %v354
  %v418 = vpack.c.b16 %v362, %v355
  %v419 = vpack.c.b16 %v363, %v356
  %v420 = vpack.c.b16 %v364, %v357
  %v421 = vpack.c.b16 %v365, %v358
  %v568 = vunpack.c.l.b16 %v85
  %v569 = vunpack.c.l.b16 %v86
  %v570 = vunpack.c.l.b16 %v87
  %v571 = vunpack.c.l.b16 %v88
  %v572 = vunpack.c.l.b16 %v89
  %v573 = vunpack.c.l.b16 %v90
  %v574 = vunpack.c.l.b16 %v91
  %v575 = vunpack.c.l.b16 %v92
  %v576 = vunpack.c.l.b16 %v93
  %v577 = vunpack.c.l.b16 %v94
  %v578 = vunpack.c.l.b16 %v95
  %v579 = vunpack.c.l.b16 %v96
  %v580 = vunpack.c.l.b16 %v97
  %v581 = vunpack.c.l.b16 %v98
  %v582 = vunpack.c.l.b16 %v99
  %v583 = vunpack.c.l.b16 %v100
  %v584 = vunpack.c.l.b16 %v101
  %v585 = vunpack.c.l.b16 %v102
  %v586 = vunpack.c.l.b16 %v103
  %v587 = vunpack.c.l.b16 %v104
  %v588 = vunpack.c.l.b16 %v105
  %v589 = vunpack.c.l.b16 %v106
  %v590 = vunpack.c.l.b16 %v107
  %v591 = vunpack.c.l.b16 %v108
  %v592 = vunpack.c.l.b16 %v109
  %v593 = vunpack.c.l.b16 %v110
  %v594 = vunpack.c.l.b16 %v111
  %v595 = vunpack.c.l.b16 %v112
  %v596 = vunpack.c.l.b16 %v113
  %v597 = vunpack.c.l.b16 %v114
  %v598 = vunpack.c.l.b16 %v115
  %v599 = vunpack.c.l.b16 %v116
  %v600 = vunpack.c.l.b16 %v117
  %v601 = vunpack.c.l.b16 %v118
  %v602 = vunpack.c.l.b16 %v119
  %v603 = vunpack.c.l.b16 %v120
  %v604 = vunpack.c.l.b16 %v121
  %v605 = vunpack.c.l.b16 %v122
  %v606 = vunpack.c.l.b16 %v123
  %v607 = vunpack.c.l.b16 %v124
  %v608 = vunpack.c.l.b16 %v125
  %v609 = vunpack.c.l.b16 %v126
  %v610 = vunpack.c.l.b16 %v127
  %v611 = vunpack.c.l.b16 %v128
  %v612 = vunpack.c.l.b16 %v129
  %v613 = vunpack.c.l.b16 %v130
  %v614 = vunpack.c.l.b16 %v131
  %v615 = vunpack.c.l.b16 %v132
  %v616 = vunpack.c.l.b16 %v133
  %v617 = vunpack.c.l.b16 %v134
  %v618 = vunpack.c.l.b16 %v135
  %v619 = vunpack.c.l.b16 %v136
  %v620 = vunpack.c.l.b16 %v137
  %v621 = vunpack.c.l.b16 %v138
  %v622 = vunpack.c.l.b16 %v139
  %v623 = vunpack.c.l.b16 %v140
  %v624 = vunpack.c.l.b16 %v141
  %v625 = vunpack.c.l.b16 %v142
  %v626 = vunpack.c.l.b16 %v143
  %v627 = vunpack.c.l.b16 %v144
  %v628 = vunpack.c.l.b16 %v145
  %v629 = vunpack.c.l.b16 %v146
  %v630 = vunpack.c.l.b16 %v147
  %v631 = vunpack.c.l.b16 %v148
  %v632 = vunpack.c.l.b16 %v149
  %v633 = vunpack.c.l.b16 %v150
  %v634 = vunpack.c.l.b16 %v151
  %v635 = vunpack.c.l.b16 %v152
  %v636 = vunpack.c.l.b16 %v153
  %v637 = vunpack.c.l.b16 %v154
  %v638 = vunpack.c.l.b16 %v155
  %v639 = vunpack.c.l.b16 %v156
  %v640 = vunpack.c.l.b16 %v157
  %v641 = vunpack.c.l.b16 %v158
  %v642 = vunpack.c.l.b16 %v159
  %v643 = vunpack.c.l.b16 %v160
  %v644 = vunpack.c.l.b16 %v161
  %v645 = vunpack.c.l.b16 %v162
  %v646 = vunpack.c.l.b16 %v163
  %v647 = vunpack.c.l.b16 %v164
  %v648 = vunpack.c.l.b16 %v165
  %v649 = vunpack.c.l.b16 %v166
  %v650 = vunpack.c.l.b16 %v167
  %v651 = vunpack.c.l.b16 %v168
  %v652 = vunpack.c.l.b16 %v169
  %v653 = vunpack.c.l.b16 %v170
  %v654 = vunpack.c.l.b16 %v171
  %v655 = vunpack.c.l.b16 %v172
  %v656 = vunpack.c.l.b16 %v173
  %v657 = vunpack.c.l.b16 %v174
  %v658 = vunpack.c.l.b16 %v175
  %v659 = vunpack.c.l.b16 %v176
  %v660 = vunpack.c.l.b16 %v177
  %v661 = vunpack.c.l.b16 %v178
  %v662 = vunpack.c.l.b16 %v179
  %v663 = vunpack.c.l.b16 %v180
  %v664 = vunpack.c.l.b16 %v181
  %v665 = vunpack.c.l.b16 %v182
  %v666 = vpack.c.b16 %v569, %v568
  %v667 = vpack.c.b16 %v571, %v570
  %v668 = vpack.c.b16 %v573, %v572
  %v669 = vpack.c.b16 %v575, %v574
  %v670 = vpack.c.b16 %v577, %v576
  %v671 = vpack.c.b16 %v579, %v578
  %v672 = vpack.c.b16 %v581, %v580
  %v673 = vpack.c.b16 %v583, %v582
  %v674 = vpack.c.b16 %v585, %v584
  %v675 = vpack.c.b16 %v587, %v586
  %v676 = vpack.c.b16 %v589, %v588
  %v677 = vpack.c.b16 %v591, %v590
  %v678 = vpack.c.b16 %v593, %v592
  %v679 = vpack.c.b16 %v595, %v594
  %v680 = vpack.c.b16 %v597, %v596
  %v681 = vpack.c.b16 %v599, %v598
  %v682 = vpack.c.b16 %v601, %v600
  %v683 = vpack.c.b16 %v603, %v602
  %v684 = vpack.c.b16 %v605, %v604
  %v685 = vpack.c.b16 %v607, %v606
  %v686 = vpack.c.b16 %v609, %v608
  %v687 = vpack.c.b16 %v611, %v610
  %v688 = vpack.c.b16 %v613, %v612
  %v689 = vpack.c.b16 %v615, %v614
  %v690 = vpack.c.b16 %v617, %v616
  %v691 = vpack.c.b16 %v619, %v618
  %v692 = vpack.c.b16 %v621, %v620
  %v693 = vpack.c.b16 %v623, %v622
  %v694 = vpack.c.b16 %v625, %v624
  %v695 = vpack.c.b16 %v627, %v626
  %v696 = vpack.c.b16 %v629, %v628
  %v697 = vpack.c.b16 %v631, %v630
  %v698 = vpack.c.b16 %v633, %v632
  %v699 = vpack.c.b16 %v635, %v634
  %v700 = vpack.c.b16 %v637, %v636
  %v701 = vpack.c.b16 %v639, %v638
  %v702 = vpack.c.b16 %v641, %v640
  %v703 = vpack.c.b16 %v643, %v642
  %v704 = vpack.c.b16 %v645, %v644
  %v705 = vpack.c.b16 %v647, %v646
  %v706 = vpack.c.b16 %v649, %v648
  %v707 = vpack.c.b16 %v651, %v650
  %v708 = vpack.c.b16 %v653, %v652
  %v709 = vpack.c.b16 %v655, %v654
  %v710 = vpack.c.b16 %v657, %v656
  %v711 = vpack.c.b16 %v659, %v658
  %v712 = vpack.c.b16 %v661, %v660
  %v713 = vpack.c.b16 %v663, %v662
  %v714 = vpack.c.b16 %v665, %v664
  %vm764 = vcmask 130048
  %v766 = vsel %vm764, %v372, 0
  %v769 = vsel %vm764, %v379, 0
  %v772 = vsel %vm764, %v386, 0
  %v775 = vsel %vm764, %v393, 0
  %v778 = vsel %vm764, %v400, 0
  %v781 = vsel %vm764, %v407, 0
  %v784 = vsel %vm764, %v414, 0
  %v787 = vsel %vm764, %v421, 0
  %789 = vmatprep.subr.bf16.mxu0 0
  %790 = vmatpush1.bf16.msra.mxu0 %v666
  %791 = vmatprep.subr.bf16.mxu0 0
  %792 = vmatpush1.bf16.msra.mxu0 %v667
  %793 = vmatprep.subr.bf16.mxu0 0
  %794 = vmatpush1.bf16.msra.mxu0 %v668
  %795 = vmatprep.subr.bf16.mxu0 0
  %796 = vmatpush1.bf16.msra.mxu0 %v669
  %797 = vmatprep.subr.bf16.mxu0 0
  %798 = vmatpush1.bf16.msra.mxu0 %v670
  %799 = vmatprep.subr.bf16.mxu0 0
  %800 = vmatpush1.bf16.msra.mxu0 %v671
  %801 = vmatprep.subr.bf16.mxu0 0
  %802 = vmatpush1.bf16.msra.mxu0 %v672
  %803 = vmatprep.subr.bf16.mxu0 0
  %804 = vmatpush1.bf16.msra.mxu0 %v673
  %805 = vmatprep.subr.bf16.mxu0 0
  %806 = vmatpush1.bf16.msra.mxu0 %v674
  %807 = vmatprep.subr.bf16.mxu0 0
  %808 = vmatpush1.bf16.msra.mxu0 %v675
  %809 = vmatprep.subr.bf16.mxu0 0
  %810 = vmatpush1.bf16.msra.mxu0 %v676
  %811 = vmatprep.subr.bf16.mxu0 0
  %812 = vmatpush1.bf16.msra.mxu0 %v677
  %813 = vmatprep.subr.bf16.mxu0 0
  %814 = vmatpush1.bf16.msra.mxu0 %v678
  %815 = vmatprep.subr.bf16.mxu0 0
  %816 = vmatpush1.bf16.msra.mxu0 %v679
  %817 = vmatprep.subr.bf16.mxu0 0
  %818 = vmatpush1.bf16.msra.mxu0 %v680
  %819 = vmatprep.subr.bf16.mxu0 0
  %820 = vmatpush1.bf16.msra.mxu0 %v681
  %821 = vmatprep.mubr.bf16.mxu0 %v367
  %822 = vmatmul.mubr.bf16.gmra.mrb[0].mxu0 %v366
  %v823 = vpop.f32.mrb[0].mxu0
  %v824 = vadd.f32 %v188, %v823
  %v825 = vpop.f32.mrb[0].mxu0
  %v826 = vpop.f32.mrb[0].mxu0
  %v827 = vadd.f32 %v188, %v826
  %v828 = vpop.f32.mrb[0].mxu0
  %829 = vmatprep.mubr.bf16.mxu0 %v374
  %830 = vmatmul.mubr.bf16.gmra.mrb[0].mxu0 %v373
  %v831 = vpop.f32.mrb[0].mxu0
  %v832 = vadd.f32 %v188, %v831
  %v833 = vpop.f32.mrb[0].mxu0
  %v834 = vpop.f32.mrb[0].mxu0
  %v835 = vadd.f32 %v188, %v834
  %v836 = vpop.f32.mrb[0].mxu0
  %837 = vmatprep.mubr.bf16.mxu0 %v381
  %838 = vmatmul.mubr.bf16.gmra.mrb[0].mxu0 %v380
  %v839 = vpop.f32.mrb[0].mxu0
  %v840 = vadd.f32 %v188, %v839
  %v841 = vpop.f32.mrb[0].mxu0
  %v842 = vpop.f32.mrb[0].mxu0
  %v843 = vadd.f32 %v188, %v842
  %v844 = vpop.f32.mrb[0].mxu0
  %845 = vmatprep.mubr.bf16.mxu0 %v388
  %846 = vmatmul.mubr.bf16.gmra.mrb[0].mxu0 %v387
  %v847 = vpop.f32.mrb[0].mxu0
  %v848 = vadd.f32 %v188, %v847
  %v849 = vpop.f32.mrb[0].mxu0
  %v850 = vpop.f32.mrb[0].mxu0
  %v851 = vadd.f32 %v188, %v850
  %v852 = vpop.f32.mrb[0].mxu0
  %853 = vmatprep.mubr.bf16.mxu0 %v395
  %854 = vmatmul.mubr.bf16.gmra.mrb[0].mxu0 %v394
  %v855 = vpop.f32.mrb[0].mxu0
  %v856 = vadd.f32 %v188, %v855
  %v857 = vpop.f32.mrb[0].mxu0
  %v858 = vpop.f32.mrb[0].mxu0
  %v859 = vadd.f32 %v188, %v858
  %v860 = vpop.f32.mrb[0].mxu0
  %861 = vmatprep.mubr.bf16.mxu0 %v402
  %862 = vmatmul.mubr.bf16.gmra.mrb[0].mxu0 %v401
  %v863 = vpop.f32.mrb[0].mxu0
  %v864 = vadd.f32 %v188, %v863
  %v865 = vpop.f32.mrb[0].mxu0
  %v866 = vpop.f32.mrb[0].mxu0
  %v867 = vadd.f32 %v188, %v866
  %v868 = vpop.f32.mrb[0].mxu0
  %869 = vmatprep.mubr.bf16.mxu0 %v409
  %870 = vmatmul.mubr.bf16.gmra.mrb[0].mxu0 %v408
  %v871 = vpop.f32.mrb[0].mxu0
  %v872 = vadd.f32 %v188, %v871
  %v873 = vpop.f32.mrb[0].mxu0
  %v874 = vpop.f32.mrb[0].mxu0
  %v875 = vadd.f32 %v188, %v874
  %v876 = vpop.f32.mrb[0].mxu0
  %877 = vmatprep.mubr.bf16.mxu0 %v416
  %878 = vmatmul.mubr.bf16.gmra.mrb[0].mxu0 %v415
  %v879 = vpop.f32.mrb[0].mxu0
  %v880 = vadd.f32 %v188, %v879
  %v881 = vpop.f32.mrb[0].mxu0
  %v882 = vpop.f32.mrb[0].mxu0
  %v883 = vadd.f32 %v188, %v882
  %v884 = vpop.f32.mrb[0].mxu0
  %885 = vdwg.mxu0
  %886 = vmatprep.subr.bf16.mxu0 0
  %887 = vmatpush1.bf16.msra.mxu0 %v682
  %888 = vmatprep.subr.bf16.mxu0 0
  %889 = vmatpush1.bf16.msra.mxu0 %v683
  %890 = vmatprep.subr.bf16.mxu0 0
  %891 = vmatpush1.bf16.msra.mxu0 %v684
  %892 = vmatprep.subr.bf16.mxu0 0
  %893 = vmatpush1.bf16.msra.mxu0 %v685
  %894 = vmatprep.subr.bf16.mxu0 0
  %895 = vmatpush1.bf16.msra.mxu0 %v686
  %896 = vmatprep.subr.bf16.mxu0 0
  %897 = vmatpush1.bf16.msra.mxu0 %v687
  %898 = vmatprep.subr.bf16.mxu0 0
  %899 = vmatpush1.bf16.msra.mxu0 %v688
  %900 = vmatprep.subr.bf16.mxu0 0
  %901 = vmatpush1.bf16.msra.mxu0 %v689
  %902 = vmatprep.subr.bf16.mxu0 0
  %903 = vmatpush1.bf16.msra.mxu0 %v690
  %904 = vmatprep.subr.bf16.mxu0 0
  %905 = vmatpush1.bf16.msra.mxu0 %v691
  %906 = vmatprep.subr.bf16.mxu0 0
  %907 = vmatpush1.bf16.msra.mxu0 %v692
  %908 = vmatprep.subr.bf16.mxu0 0
  %909 = vmatpush1.bf16.msra.mxu0 %v693
  %910 = vmatprep.subr.bf16.mxu0 0
  %911 = vmatpush1.bf16.msra.mxu0 %v694
  %912 = vmatprep.subr.bf16.mxu0 0
  %913 = vmatpush1.bf16.msra.mxu0 %v695
  %914 = vmatprep.subr.bf16.mxu0 0
  %915 = vmatpush1.bf16.msra.mxu0 %v696
  %916 = vmatprep.subr.bf16.mxu0 0
  %917 = vmatpush1.bf16.msra.mxu0 %v697
  %918 = vmatprep.mubr.bf16.mxu0 %v369
  %919 = vmatmul.mubr.bf16.gmra.mrb[0].mxu0 %v368
  %v920 = vpop.f32.mrb[0].mxu0
  %v921 = vadd.f32 %v824, %v920
  %v922 = vpop.f32.mrb[0].mxu0
  %v923 = vpop.f32.mrb[0].mxu0
  %v924 = vadd.f32 %v827, %v923
  %v925 = vpop.f32.mrb[0].mxu0
  %926 = vmatprep.mubr.bf16.mxu0 %v376
  %927 = vmatmul.mubr.bf16.gmra.mrb[0].mxu0 %v375
  %v928 = vpop.f32.mrb[0].mxu0
  %v929 = vadd.f32 %v832, %v928
  %v930 = vpop.f32.mrb[0].mxu0
  %v931 = vpop.f32.mrb[0].mxu0
  %v932 = vadd.f32 %v835, %v931
  %v933 = vpop.f32.mrb[0].mxu0
  %934 = vmatprep.mubr.bf16.mxu0 %v383
  %935 = vmatmul.mubr.bf16.gmra.mrb[0].mxu0 %v382
  %v936 = vpop.f32.mrb[0].mxu0
  %v937 = vadd.f32 %v840, %v936
  %v938 = vpop.f32.mrb[0].mxu0
  %v939 = vpop.f32.mrb[0].mxu0
  %v940 = vadd.f32 %v843, %v939
  %v941 = vpop.f32.mrb[0].mxu0
  %942 = vmatprep.mubr.bf16.mxu0 %v390
  %943 = vmatmul.mubr.bf16.gmra.mrb[0].mxu0 %v389
  %v944 = vpop.f32.mrb[0].mxu0
  %v945 = vadd.f32 %v848, %v944
  %v946 = vpop.f32.mrb[0].mxu0
  %v947 = vpop.f32.mrb[0].mxu0
  %v948 = vadd.f32 %v851, %v947
  %v949 = vpop.f32.mrb[0].mxu0
  %950 = vmatprep.mubr.bf16.mxu0 %v397
  %951 = vmatmul.mubr.bf16.gmra.mrb[0].mxu0 %v396
  %v952 = vpop.f32.mrb[0].mxu0
  %v953 = vadd.f32 %v856, %v952
  %v954 = vpop.f32.mrb[0].mxu0
  %v955 = vpop.f32.mrb[0].mxu0
  %v956 = vadd.f32 %v859, %v955
  %v957 = vpop.f32.mrb[0].mxu0
  %958 = vmatprep.mubr.bf16.mxu0 %v404
  %959 = vmatmul.mubr.bf16.gmra.mrb[0].mxu0 %v403
  %v960 = vpop.f32.mrb[0].mxu0
  %v961 = vadd.f32 %v864, %v960
  %v962 = vpop.f32.mrb[0].mxu0
  %v963 = vpop.f32.mrb[0].mxu0
  %v964 = vadd.f32 %v867, %v963
  %v965 = vpop.f32.mrb[0].mxu0
  %966 = vmatprep.mubr.bf16.mxu0 %v411
  %967 = vmatmul.mubr.bf16.gmra.mrb[0].mxu0 %v410
  %v968 = vpop.f32.mrb[0].mxu0
  %v969 = vadd.f32 %v872, %v968
  %v970 = vpop.f32.mrb[0].mxu0
  %v971 = vpop.f32.mrb[0].mxu0
  %v972 = vadd.f32 %v875, %v971
  %v973 = vpop.f32.mrb[0].mxu0
  %974 = vmatprep.mubr.bf16.mxu0 %v418
  %975 = vmatmul.mubr.bf16.gmra.mrb[0].mxu0 %v417
  %v976 = vpop.f32.mrb[0].mxu0
  %v977 = vadd.f32 %v880, %v976
  %v978 = vpop.f32.mrb[0].mxu0
  %v979 = vpop.f32.mrb[0].mxu0
  %v980 = vadd.f32 %v883, %v979
  %v981 = vpop.f32.mrb[0].mxu0
  %982 = vdwg.mxu0
  %983 = vmatprep.subr.bf16.mxu0 0
  %984 = vmatpush1.bf16.msra.mxu0 %v698
  %985 = vmatprep.subr.bf16.mxu0 0
  %986 = vmatpush1.bf16.msra.mxu0 %v699
  %987 = vmatprep.subr.bf16.mxu0 0
  %988 = vmatpush1.bf16.msra.mxu0 %v700
  %989 = vmatprep.subr.bf16.mxu0 0
  %990 = vmatpush1.bf16.msra.mxu0 %v701
  %991 = vmatprep.subr.bf16.mxu0 0
  %992 = vmatpush1.bf16.msra.mxu0 %v702
  %993 = vmatprep.subr.bf16.mxu0 0
  %994 = vmatpush1.bf16.msra.mxu0 %v703
  %995 = vmatprep.subr.bf16.mxu0 0
  %996 = vmatpush1.bf16.msra.mxu0 %v704
  %997 = vmatprep.subr.bf16.mxu0 0
  %998 = vmatpush1.bf16.msra.mxu0 %v705
  %999 = vmatprep.subr.bf16.mxu0 0
  %1000 = vmatpush1.bf16.msra.mxu0 %v706
  %1001 = vmatprep.subr.bf16.mxu0 0
  %1002 = vmatpush1.bf16.msra.mxu0 %v707
  %1003 = vmatprep.subr.bf16.mxu0 0
  %1004 = vmatpush1.bf16.msra.mxu0 %v708
  %1005 = vmatprep.subr.bf16.mxu0 0
  %1006 = vmatpush1.bf16.msra.mxu0 %v709
  %1007 = vmatprep.subr.bf16.mxu0 0
  %1008 = vmatpush1.bf16.msra.mxu0 %v710
  %1009 = vmatprep.subr.bf16.mxu0 0
  %1010 = vmatpush1.bf16.msra.mxu0 %v711
  %1011 = vmatprep.subr.bf16.mxu0 0
  %1012 = vmatpush1.bf16.msra.mxu0 %v712
  %1013 = vmatprep.subr.bf16.mxu0 0
  %1014 = vmatpush1.bf16.msra.mxu0 %v713
  %1015 = vmatprep.mubr.bf16.mxu0 %v371
  %1016 = vmatmul.mubr.bf16.gmra.mrb[0].mxu0 %v370
  %v1017 = vpop.f32.mrb[0].mxu0
  %v1018 = vadd.f32 %v921, %v1017
  %v1019 = vpop.f32.mrb[0].mxu0
  %v1020 = vpop.f32.mrb[0].mxu0
  %v1021 = vadd.f32 %v924, %v1020
  %v1022 = vpop.f32.mrb[0].mxu0
  %1023 = vmatprep.mubr.bf16.mxu0 %v378
  %1024 = vmatmul.mubr.bf16.gmra.mrb[0].mxu0 %v377
  %v1025 = vpop.f32.mrb[0].mxu0
  %v1026 = vadd.f32 %v929, %v1025
  %v1027 = vpop.f32.mrb[0].mxu0
  %v1028 = vpop.f32.mrb[0].mxu0
  %v1029 = vadd.f32 %v932, %v1028
  %v1030 = vpop.f32.mrb[0].mxu0
  %1031 = vmatprep.mubr.bf16.mxu0 %v385
  %1032 = vmatmul.mubr.bf16.gmra.mrb[0].mxu0 %v384
  %v1033 = vpop.f32.mrb[0].mxu0
  %v1034 = vadd.f32 %v937, %v1033
  %v1035 = vpop.f32.mrb[0].mxu0
  %v1036 = vpop.f32.mrb[0].mxu0
  %v1037 = vadd.f32 %v940, %v1036
  %v1038 = vpop.f32.mrb[0].mxu0
  %1039 = vmatprep.mubr.bf16.mxu0 %v392
  %1040 = vmatmul.mubr.bf16.gmra.mrb[0].mxu0 %v391
  %v1041 = vpop.f32.mrb[0].mxu0
  %v1042 = vadd.f32 %v945, %v1041
  %v1043 = vpop.f32.mrb[0].mxu0
  %v1044 = vpop.f32.mrb[0].mxu0
  %v1045 = vadd.f32 %v948, %v1044
  %v1046 = vpop.f32.mrb[0].mxu0
  %1047 = vmatprep.mubr.bf16.mxu0 %v399
  %1048 = vmatmul.mubr.bf16.gmra.mrb[0].mxu0 %v398
  %v1049 = vpop.f32.mrb[0].mxu0
  %v1050 = vadd.f32 %v953, %v1049
  %v1051 = vpop.f32.mrb[0].mxu0
  %v1052 = vpop.f32.mrb[0].mxu0
  %v1053 = vadd.f32 %v956, %v1052
  %v1054 = vpop.f32.mrb[0].mxu0
  %1055 = vmatprep.mubr.bf16.mxu0 %v406
  %1056 = vmatmul.mubr.bf16.gmra.mrb[0].mxu0 %v405
  %v1057 = vpop.f32.mrb[0].mxu0
  %v1058 = vadd.f32 %v961, %v1057
  %v1059 = vpop.f32.mrb[0].mxu0
  %v1060 = vpop.f32.mrb[0].mxu0
  %v1061 = vadd.f32 %v964, %v1060
  %v1062 = vpop.f32.mrb[0].mxu0
  %1063 = vmatprep.mubr.bf16.mxu0 %v413
  %1064 = vmatmul.mubr.bf16.gmra.mrb[0].mxu0 %v412
  %v1065 = vpop.f32.mrb[0].mxu0
  %v1066 = vadd.f32 %v969, %v1065
  %v1067 = vpop.f32.mrb[0].mxu0
  %v1068 = vpop.f32.mrb[0].mxu0
  %v1069 = vadd.f32 %v972, %v1068
  %v1070 = vpop.f32.mrb[0].mxu0
  %1071 = vmatprep.mubr.bf16.mxu0 %v420
  %1072 = vmatmul.mubr.bf16.gmra.mrb[0].mxu0 %v419
  %v1073 = vpop.f32.mrb[0].mxu0
  %v1074 = vadd.f32 %v977, %v1073
  %v1075 = vpop.f32.mrb[0].mxu0
  %v1076 = vpop.f32.mrb[0].mxu0
  %v1077 = vadd.f32 %v980, %v1076
  %v1078 = vpop.f32.mrb[0].mxu0
  %1079 = vdwg.mxu0
  %1080 = vmatprep.subr.bf16.mxu0 0
  %1081 = vmatpush1.bf16.msra.mxu0 %v714
  %1082 = vmatprep.subr.bf16.mxu0 0
  %1083 = vmatpush1.bf16.msra.mxu0 0
  %1084 = vmatprep.subr.bf16.mxu0 0
  %1085 = vmatpush1.bf16.msra.mxu0 0
  %1086 = vmatprep.subr.bf16.mxu0 0
  %1087 = vmatpush1.bf16.msra.mxu0 0
  %1088 = vmatprep.subr.bf16.mxu0 0
  %1089 = vmatpush1.bf16.msra.mxu0 0
  %1090 = vmatprep.subr.bf16.mxu0 0
  %1091 = vmatpush1.bf16.msra.mxu0 0
  %1092 = vmatprep.subr.bf16.mxu0 0
  %1093 = vmatpush1.bf16.msra.mxu0 0
  %1094 = vmatprep.subr.bf16.mxu0 0
  %1095 = vmatpush1.bf16.msra.mxu0 0
  %1096 = vmatprep.subr.bf16.mxu0 0
  %1097 = vmatpush1.bf16.msra.mxu0 0
  %1098 = vmatprep.subr.bf16.mxu0 0
  %1099 = vmatpush1.bf16.msra.mxu0 0
  %1100 = vmatprep.subr.bf16.mxu0 0
  %1101 = vmatpush1.bf16.msra.mxu0 0
  %1102 = vmatprep.subr.bf16.mxu0 0
  %1103 = vmatpush1.bf16.msra.mxu0 0
  %1104 = vmatprep.subr.bf16.mxu0 0
  %1105 = vmatpush1.bf16.msra.mxu0 0
  %1106 = vmatprep.subr.bf16.mxu0 0
  %1107 = vmatpush1.bf16.msra.mxu0 0
  %1108 = vmatprep.subr.bf16.mxu0 0
  %1109 = vmatpush1.bf16.msra.mxu0 0
  %1110 = vmatprep.subr.bf16.mxu0 0
  %1111 = vmatpush1.bf16.msra.mxu0 0
  %1112 = vmatprep.mubr.bf16.mxu0 0
  %1113 = vmatmul.mubr.bf16.gmra.mrb[0].mxu0 %v766
  %v1114 = vpop.f32.mrb[0].mxu0
  %v1115 = vadd.f32 %v1018, %v1114
  %v1116 = vpop.f32.mrb[0].mxu0
  %v1117 = vpop.f32.mrb[0].mxu0
  %v1118 = vadd.f32 %v1021, %v1117
  %v1119 = vpop.f32.mrb[0].mxu0
  %1120 = vmatprep.mubr.bf16.mxu0 0
  %1121 = vmatmul.mubr.bf16.gmra.mrb[0].mxu0 %v769
  %v1122 = vpop.f32.mrb[0].mxu0
  %v1123 = vadd.f32 %v1026, %v1122
  %v1124 = vpop.f32.mrb[0].mxu0
  %v1125 = vpop.f32.mrb[0].mxu0
  %v1126 = vadd.f32 %v1029, %v1125
  %v1127 = vpop.f32.mrb[0].mxu0
  %1128 = vmatprep.mubr.bf16.mxu0 0
  %1129 = vmatmul.mubr.bf16.gmra.mrb[0].mxu0 %v772
  %v1130 = vpop.f32.mrb[0].mxu0
  %v1131 = vadd.f32 %v1034, %v1130
  %v1132 = vpop.f32.mrb[0].mxu0
  %v1133 = vpop.f32.mrb[0].mxu0
  %v1134 = vadd.f32 %v1037, %v1133
  %v1135 = vpop.f32.mrb[0].mxu0
  %1136 = vmatprep.mubr.bf16.mxu0 0
  %1137 = vmatmul.mubr.bf16.gmra.mrb[0].mxu0 %v775
  %v1138 = vpop.f32.mrb[0].mxu0
  %v1139 = vadd.f32 %v1042, %v1138
  %v1140 = vpop.f32.mrb[0].mxu0
  %v1141 = vpop.f32.mrb[0].mxu0
  %v1142 = vadd.f32 %v1045, %v1141
  %v1143 = vpop.f32.mrb[0].mxu0
  %1144 = vmatprep.mubr.bf16.mxu0 0
  %1145 = vmatmul.mubr.bf16.gmra.mrb[0].mxu0 %v778
  %v1146 = vpop.f32.mrb[0].mxu0
  %v1147 = vadd.f32 %v1050, %v1146
  %v1148 = vpop.f32.mrb[0].mxu0
  %v1149 = vpop.f32.mrb[0].mxu0
  %v1150 = vadd.f32 %v1053, %v1149
  %v1151 = vpop.f32.mrb[0].mxu0
  %1152 = vmatprep.mubr.bf16.mxu0 0
  %1153 = vmatmul.mubr.bf16.gmra.mrb[0].mxu0 %v781
  %v1154 = vpop.f32.mrb[0].mxu0
  %v1155 = vadd.f32 %v1058, %v1154
  %v1156 = vpop.f32.mrb[0].mxu0
  %v1157 = vpop.f32.mrb[0].mxu0
  %v1158 = vadd.f32 %v1061, %v1157
  %v1159 = vpop.f32.mrb[0].mxu0
  %1160 = vmatprep.mubr.bf16.mxu0 0
  %1161 = vmatmul.mubr.bf16.gmra.mrb[0].mxu0 %v784
  %v1162 = vpop.f32.mrb[0].mxu0
  %v1163 = vadd.f32 %v1066, %v1162
  %v1164 = vpop.f32.mrb[0].mxu0
  %v1165 = vpop.f32.mrb[0].mxu0
  %v1166 = vadd.f32 %v1069, %v1165
  %v1167 = vpop.f32.mrb[0].mxu0
  %1168 = vmatprep.mubr.bf16.mxu0 0
  %1169 = vmatmul.mubr.bf16.gmra.mrb[0].mxu0 %v787
  %v1170 = vpop.f32.mrb[0].mxu0
  %v1171 = vadd.f32 %v1074, %v1170
  %v1172 = vpop.f32.mrb[0].mxu0
  %v1173 = vpop.f32.mrb[0].mxu0
  %v1174 = vadd.f32 %v1077, %v1173
  %v1175 = vpop.f32.mrb[0].mxu0
  %1176 = vdwg.mxu0
  %v1177 = vmax.f32 %v1115, 0.0
  %v1178 = vmax.f32 %v1118, 0.0
  %v1179 = vmax.f32 %v1123, 0.0
  %v1180 = vmax.f32 %v1126, 0.0
  %v1181 = vmax.f32 %v1131, 0.0
  %v1182 = vmax.f32 %v1134, 0.0
  %v1183 = vmax.f32 %v1139, 0.0
  %v1184 = vmax.f32 %v1142, 0.0
  %v1185 = vmax.f32 %v1147, 0.0
  %v1186 = vmax.f32 %v1150, 0.0
  %v1187 = vmax.f32 %v1155, 0.0
  %v1188 = vmax.f32 %v1158, 0.0
  %v1189 = vmax.f32 %v1163, 0.0
  %v1190 = vmax.f32 %v1166, 0.0
  %v1191 = vmax.f32 %v1171, 0.0
  %v1192 = vmax.f32 %v1174, 0.0
  %v1193 = vpack.c.bf16 %v1178, %v1177
  %v1194 = vpack.c.bf16 %v1180, %v1179
  %v1195 = vpack.c.bf16 %v1182, %v1181
  %v1196 = vpack.c.bf16 %v1184, %v1183
  %v1197 = vpack.c.bf16 %v1186, %v1185
  %v1198 = vpack.c.bf16 %v1188, %v1187
  %v1199 = vpack.c.bf16 %v1190, %v1189
  %v1200 = vpack.c.bf16 %v1192, %v1191
  %v1201 = vld [vmem:[%s3] sm:$0xf]
  %v1202 = vld [vmem:[%s3 + $0x4] sm:$0xf]
  %v1203 = vld [vmem:[%s3 + $0x8] sm:$0xf]
  %v1204 = vld [vmem:[%s3 + $0xc] sm:$0xf]
  %v1205 = vld [vmem:[%s3 + $0x10] sm:$0xf]
  %v1206 = vld [vmem:[%s3 + $0x14] sm:$0xf]
  %v1207 = vld [vmem:[%s3 + $0x18] sm:$0xf]
  %v1208 = vld [vmem:[%s3 + $0x1c] sm:$0xf]
  %v1209 = vld [vmem:[%s3 + $0x20] sm:$0xf]
  %v1210 = vld [vmem:[%s3 + $0x24] sm:$0xf]
  %v1211 = vld [vmem:[%s3 + $0x28] sm:$0xf]
  %v1212 = vld [vmem:[%s3 + $0x2c] sm:$0xf]
  %v1213 = vld [vmem:[%s3 + $0x30] sm:$0xf]
  %v1214 = vld [vmem:[%s3 + $0x34] sm:$0xf]
  %v1215 = vld [vmem:[%s3 + $0x38] sm:$0xf]
  %v1216 = vld [vmem:[%s3 + $0x3c] sm:$0xf]
  %v1217 = vld [vmem:[%s4] sm:$0x1]
  %v1219 = vlaneseq
  %v1220 = vshrl.u32 %v1219, 7
  %v1221 = vsub.s32 0, %v1220
  %v1222 = vrot.slane %v1217, %v1221
  %v1240 = vunpack.c.l.b16 %v1201
  %v1241 = vunpack.c.l.b16 %v1202
  %v1242 = vunpack.c.l.b16 %v1203
  %v1243 = vunpack.c.l.b16 %v1204
  %v1244 = vunpack.c.l.b16 %v1205
  %v1245 = vunpack.c.l.b16 %v1206
  %v1246 = vunpack.c.l.b16 %v1207
  %v1247 = vunpack.c.l.b16 %v1208
  %v1248 = vunpack.c.l.b16 %v1209
  %v1249 = vunpack.c.l.b16 %v1210
  %v1250 = vunpack.c.l.b16 %v1211
  %v1251 = vunpack.c.l.b16 %v1212
  %v1252 = vunpack.c.l.b16 %v1213
  %v1253 = vunpack.c.l.b16 %v1214
  %v1254 = vunpack.c.l.b16 %v1215
  %v1255 = vunpack.c.l.b16 %v1216
  %v1256 = vpack.c.b16 %v1241, %v1240
  %v1257 = vpack.c.b16 %v1243, %v1242
  %v1258 = vpack.c.b16 %v1245, %v1244
  %v1259 = vpack.c.b16 %v1247, %v1246
  %v1260 = vpack.c.b16 %v1249, %v1248
  %v1261 = vpack.c.b16 %v1251, %v1250
  %v1262 = vpack.c.b16 %v1253, %v1252
  %v1263 = vpack.c.b16 %v1255, %v1254
  %1272 = vmatprep.subr.bf16.mxu0 0
  %1273 = vmatpush1.bf16.msra.mxu0 %v1256
  %1274 = vmatprep.subr.bf16.mxu0 0
  %1275 = vmatpush1.bf16.msra.mxu0 %v1257
  %1276 = vmatprep.subr.bf16.mxu0 0
  %1277 = vmatpush1.bf16.msra.mxu0 %v1258
  %1278 = vmatprep.subr.bf16.mxu0 0
  %1279 = vmatpush1.bf16.msra.mxu0 %v1259
  %1280 = vmatprep.subr.bf16.mxu0 0
  %1281 = vmatpush1.bf16.msra.mxu0 %v1260
  %1282 = vmatprep.subr.bf16.mxu0 0
  %1283 = vmatpush1.bf16.msra.mxu0 %v1261
  %1284 = vmatprep.subr.bf16.mxu0 0
  %1285 = vmatpush1.bf16.msra.mxu0 %v1262
  %1286 = vmatprep.subr.bf16.mxu0 0
  %1287 = vmatpush1.bf16.msra.mxu0 %v1263
  %1288 = vmatprep.subr.bf16.mxu0 0
  %1289 = vmatpush1.bf16.msra.mxu0 0
  %1290 = vmatprep.subr.bf16.mxu0 0
  %1291 = vmatpush1.bf16.msra.mxu0 0
  %1292 = vmatprep.subr.bf16.mxu0 0
  %1293 = vmatpush1.bf16.msra.mxu0 0
  %1294 = vmatprep.subr.bf16.mxu0 0
  %1295 = vmatpush1.bf16.msra.mxu0 0
  %1296 = vmatprep.subr.bf16.mxu0 0
  %1297 = vmatpush1.bf16.msra.mxu0 0
  %1298 = vmatprep.subr.bf16.mxu0 0
  %1299 = vmatpush1.bf16.msra.mxu0 0
  %1300 = vmatprep.subr.bf16.mxu0 0
  %1301 = vmatpush1.bf16.msra.mxu0 0
  %1302 = vmatprep.subr.bf16.mxu0 0
  %1303 = vmatpush1.bf16.msra.mxu0 0
  %1304 = vmatprep.mubr.bf16.mxu0 0
  %1305 = vmatmul.mubr.bf16.gmra.mrb[0].mxu0 %v1193
  %v1306 = vpop.f32.mrb[0].mxu0
  %v1307 = vadd.f32 %v1222, %v1306
  %v1308 = vpop.f32.mrb[0].mxu0
  %v1309 = vpop.f32.mrb[0].mxu0
  %v1310 = vadd.f32 %v1222, %v1309
  %v1311 = vpop.f32.mrb[0].mxu0
  %1312 = vmatprep.mubr.bf16.mxu0 0
  %1313 = vmatmul.mubr.bf16.gmra.mrb[0].mxu0 %v1194
  %v1314 = vpop.f32.mrb[0].mxu0
  %v1315 = vadd.f32 %v1222, %v1314
  %v1316 = vpop.f32.mrb[0].mxu0
  %v1317 = vpop.f32.mrb[0].mxu0
  %v1318 = vadd.f32 %v1222, %v1317
  %v1319 = vpop.f32.mrb[0].mxu0
  %1320 = vmatprep.mubr.bf16.mxu0 0
  %1321 = vmatmul.mubr.bf16.gmra.mrb[0].mxu0 %v1195
  %v1322 = vpop.f32.mrb[0].mxu0
  %v1323 = vadd.f32 %v1222, %v1322
  %v1324 = vpop.f32.mrb[0].mxu0
  %v1325 = vpop.f32.mrb[0].mxu0
  %v1326 = vadd.f32 %v1222, %v1325
  %v1327 = vpop.f32.mrb[0].mxu0
  %1328 = vmatprep.mubr.bf16.mxu0 0
  %1329 = vmatmul.mubr.bf16.gmra.mrb[0].mxu0 %v1196
  %v1330 = vpop.f32.mrb[0].mxu0
  %v1331 = vadd.f32 %v1222, %v1330
  %v1332 = vpop.f32.mrb[0].mxu0
  %v1333 = vpop.f32.mrb[0].mxu0
  %v1334 = vadd.f32 %v1222, %v1333
  %v1335 = vpop.f32.mrb[0].mxu0
  %1336 = vmatprep.mubr.bf16.mxu0 0
  %1337 = vmatmul.mubr.bf16.gmra.mrb[0].mxu0 %v1197
  %v1338 = vpop.f32.mrb[0].mxu0
  %v1339 = vadd.f32 %v1222, %v1338
  %v1340 = vpop.f32.mrb[0].mxu0
  %v1341 = vpop.f32.mrb[0].mxu0
  %v1342 = vadd.f32 %v1222, %v1341
  %v1343 = vpop.f32.mrb[0].mxu0
  %1344 = vmatprep.mubr.bf16.mxu0 0
  %1345 = vmatmul.mubr.bf16.gmra.mrb[0].mxu0 %v1198
  %v1346 = vpop.f32.mrb[0].mxu0
  %v1347 = vadd.f32 %v1222, %v1346
  %v1348 = vpop.f32.mrb[0].mxu0
  %v1349 = vpop.f32.mrb[0].mxu0
  %v1350 = vadd.f32 %v1222, %v1349
  %v1351 = vpop.f32.mrb[0].mxu0
  %1352 = vmatprep.mubr.bf16.mxu0 0
  %1353 = vmatmul.mubr.bf16.gmra.mrb[0].mxu0 %v1199
  %v1354 = vpop.f32.mrb[0].mxu0
  %v1355 = vadd.f32 %v1222, %v1354
  %v1356 = vpop.f32.mrb[0].mxu0
  %v1357 = vpop.f32.mrb[0].mxu0
  %v1358 = vadd.f32 %v1222, %v1357
  %v1359 = vpop.f32.mrb[0].mxu0
  %1360 = vmatprep.mubr.bf16.mxu0 0
  %1361 = vmatmul.mubr.bf16.gmra.mrb[0].mxu0 %v1200
  %v1362 = vpop.f32.mrb[0].mxu0
  %v1363 = vadd.f32 %v1222, %v1362
  %v1364 = vpop.f32.mrb[0].mxu0
  %v1365 = vpop.f32.mrb[0].mxu0
  %v1366 = vadd.f32 %v1222, %v1365
  %v1367 = vpop.f32.mrb[0].mxu0
  %1368 = vdwg.mxu0
  %vm1369 = vcmask 80896
  %1370 = vst.msk [vmem:[%s5] sm:$0xff] %vm1369, %v1307
  %1371 = vst.msk [vmem:[%s5 + $0x8] sm:$0xff] %vm1369, %v1310
  %1372 = vst.msk [vmem:[%s5 + $0x10] sm:$0xff] %vm1369, %v1315
  %1373 = vst.msk [vmem:[%s5 + $0x18] sm:$0xff] %vm1369, %v1318
  %1374 = vst.msk [vmem:[%s5 + $0x20] sm:$0xff] %vm1369, %v1323
  %1375 = vst.msk [vmem:[%s5 + $0x28] sm:$0xff] %vm1369, %v1326
  %1376 = vst.msk [vmem:[%s5 + $0x30] sm:$0xff] %vm1369, %v1331
  %1377 = vst.msk [vmem:[%s5 + $0x38] sm:$0xff] %vm1369, %v1334
  %1378 = vst.msk [vmem:[%s5 + $0x40] sm:$0xff] %vm1369, %v1339
  %1379 = vst.msk [vmem:[%s5 + $0x48] sm:$0xff] %vm1369, %v1342
  %1380 = vst.msk [vmem:[%s5 + $0x50] sm:$0xff] %vm1369, %v1347
  %1381 = vst.msk [vmem:[%s5 + $0x58] sm:$0xff] %vm1369, %v1350
  %1382 = vst.msk [vmem:[%s5 + $0x60] sm:$0xff] %vm1369, %v1355
  %1383 = vst.msk [vmem:[%s5 + $0x68] sm:$0xff] %vm1369, %v1358
  %1384 = vst.msk [vmem:[%s5 + $0x70] sm:$0xff] %vm1369, %v1363
  %1385 = vst.msk [vmem:[%s5 + $0x78] sm:$0xff] %vm1369, %v1366
  // Predicated region
  $region22: #{tpu_custom_call.1} parent=0 // pred_check
    _
  $region23: #{tpu_custom_call.1} parent=0 // pred_check_branch
    %1387 = sbr.rel (0) target = $region25
  $region24: #{tpu_custom_call.1} parent=0 // pred_region
    _
  $region25: #{tpu_custom_call.1} parent=0 // pred_fallthru
    _
  // Predicated region
  $region26: #{tpu_custom_call.1} parent=0 // pred_check
    _
  $region27: #{tpu_custom_call.1} parent=0 // pred_check_branch
    %1389 = sbr.rel (0) target = $region29
  $region28: #{tpu_custom_call.1} parent=0 // pred_region
    _
  $region29: #{tpu_custom_call.1} parent=0 // pred_fallthru
    _

</llo_original>
